<compile_context>
chip_gen: v6e
topology: v6e:2x2x1
jax: 0.10.0
libtpu: 0.0.40
codegen_flags: <defaults>
</compile_context>

<pallas_src>
import functools

import jax
import jax.numpy as jnp
from jax.experimental import pallas as pl
from jax.experimental.pallas import tpu as pltpu


def _pool_kernel(x_ref, p_ref, o_ref, acc_ref, *, inv_window):
    """x_ref: (block_r, block_k) rows x window-columns tile of the input slab.
    p_ref:  (block_k, OW) 0/1 pooling-selection matrix tile.
    o_ref:  (block_r, OW) pooled output tile.
    acc_ref:(block_r, OW) f32 running sum across the K grid axis.
    """
    k = pl.program_id(1)

    @pl.when(k == 0)
    def _():
        acc_ref[...] = jnp.zeros_like(acc_ref)

    # f32 accumulation on the MXU; P is 0/1 so this is a pure windowed sum.
    acc_ref[...] += jnp.dot(x_ref[...].astype(jnp.float32), p_ref[...],
                            preferred_element_type=jnp.float32)

    @pl.when(k == pl.num_programs(1) - 1)
    def _():
        # Single multiply by 1/(SH*SW) on the small output tile (true window
        # size, independent of how K was blocked).
        o_ref[...] = (acc_ref[...] * inv_window).astype(o_ref.dtype)


def _pick_blocks(R, K, itemsize, target_tile_bytes=4 * 1024 * 1024):
    """Choose (block_r, block_k) so one input tile is ~target_tile_bytes."""
    # block_k must divide K exactly (a ragged K block would fold garbage into
    # the accumulator) and be lane-aligned (multiple of 128) unless it is K.
    cap_k = max(1, target_tile_bytes // (8 * itemsize))
    if K <= cap_k:
        block_k = K
    else:
        block_k = None
        for d in range(128, min(K, cap_k) + 1, 128):
            if K % d == 0:
                block_k = d
        if block_k is None:
            # TODO(synk): K has no lane-aligned divisor under the byte budget;
            # fall back to a single in-tile reduction (bigger tile).
            block_k = K

    block_r = max(8, (target_tile_bytes // (block_k * itemsize)) // 8 * 8)
    # Keep at least two parallel grid steps when possible so v7x (2 TCs/chip)
    # can shard rows across both cores; harmless on single-TC v5e/v6e.
    if R >= 16:
        block_r = min(block_r, max(8, (((R + 1) // 2) + 7) // 8 * 8))
    block_r = min(block_r, ((R + 7) // 8) * 8)
    return int(block_r), int(block_k)


@functools.partial(jax.jit, static_argnames=("output_size",))
def adaptive_avg_pool2d(x, output_size=(4, 4)):
    """Forward of nn.AdaptiveAvgPool2d(output_size) on an NCHW input."""
    N, C, H, W = x.shape
    OH, OW = output_size
    assert H % OH == 0 and W % OW == 0, "only divisible adaptive pooling supported"
    SH, SW = H // OH, W // OW
    R = N * C * OH                  # output rows
    K = SH * W                      # contraction length (whole window strip)

    # Free reshape (no transpose, no HBM copy):
    #   row r = (n, c, oh), column k = sh * W + ow * SW + sw.
    xr = x.reshape(R, K)

    # 0/1 selection matrix folding each window strip into its OW outputs.
    col = jnp.arange(K, dtype=jnp.int32) % W
    p = (col[:, None] // SW == jnp.arange(OW, dtype=jnp.int32)[None, :])
    p = p.astype(jnp.float32)       # (K, OW); 1/(SH*SW) applied in-kernel once.

    itemsize = jnp.dtype(x.dtype).itemsize
    block_r, block_k = _pick_blocks(R, K, itemsize)
    grid_r = -(-R // block_r)
    grid_k = K // block_k
    grid = (grid_r, grid_k)

    cost = pl.CostEstimate(
        flops=int(2 * R * K * OW),
        transcendentals=0,
        bytes_accessed=int(R * K * itemsize + R * OW * itemsize
                           + grid_r * K * OW * 4),
    )

    out = pl.pallas_call(
        functools.partial(_pool_kernel, inv_window=1.0 / float(SH * SW)),
        out_shape=jax.ShapeDtypeStruct((R, OW), x.dtype),
        grid=grid,
        in_specs=[
            pl.BlockSpec((block_r, block_k), lambda i, k: (i, k)),
            pl.BlockSpec((block_k, OW), lambda i, k: (k, 0)),
        ],
        out_specs=pl.BlockSpec((block_r, OW), lambda i, k: (i, 0)),
        scratch_shapes=[pltpu.VMEM((block_r, OW), jnp.float32)],
        compiler_params=pltpu.CompilerParams(
            dimension_semantics=("parallel", "arbitrary")),
        cost_estimate=cost,
    )(xr, p)

    # Free reshape back to NCHW.
    return out.reshape(N, C, OH, OW)


def _reference_adaptive_avg_pool2d(x, output_size):
    N, C, H, W = x.shape
    OH, OW = output_size
    SH, SW = H // OH, W // OW
    return x.reshape(N, C, OH, SH, OW, SW).mean(axis=(3, 5))


if __name__ == "__main__":
    key = jax.random.PRNGKey(0)
    # Module config: AdaptiveAvgPool2d(output_size=(4, 4)); eps unused in fwd.
    x = jax.random.normal(key, (2, 4, 16, 16), dtype=jnp.float32)

    out = adaptive_avg_pool2d(x, output_size=(4, 4))
    out = jax.block_until_ready(out)

    ref = _reference_adaptive_avg_pool2d(x, (4, 4))
    assert out.shape == (2, 4, 4, 4), out.shape
    # Tolerance leaves headroom for MXU accumulation order / multi-pass f32
    # matmul rounding of the windowed sum.
    assert jnp.allclose(out, ref, atol=2e-3, rtol=2e-3), "mismatch vs reference"

    print("KERNEL_OK")
</pallas_src>

<mosaic_0001>
module attributes {stable_mosaic.version = 11 : i64} {
  func.func @_pool_kernel(%arg0: i32, %arg1: i32, %arg2: memref<16x64xf32, #tpu.memory_space<vmem>>, %arg3: memref<64x4xf32, #tpu.memory_space<vmem>>, %arg4: memref<16x4xf32, #tpu.memory_space<vmem>>, %arg5: memref<16x4xf32, #tpu.memory_space<vmem>>) attributes {dimension_semantics = [#tpu.dimension_semantics<parallel>, #tpu.dimension_semantics<arbitrary>], iteration_bounds = array<i64: 2, 1>, scalar_prefetch = 0 : i64, scratch_operands = 1 : i64, tpu.core_type = #tpu.core_type<tc>, window_params = [{transform_indices = @transform_0, window_bounds = array<i64: 16, 64>}, {transform_indices = @transform_1, window_bounds = array<i64: 64, 4>}, {transform_indices = @transform_2, window_bounds = array<i64: 16, 4>}]} {
    %c0_i32 = arith.constant 0 : i32
    %0 = arith.cmpi eq, %arg1, %c0_i32 : i32
    %1 = arith.extui %0 : i1 to i32
    %c0_i32_0 = arith.constant 0 : i32
    %2 = arith.cmpi ne, %1, %c0_i32_0 : i32
    scf.if %2 {
      %cst_10 = arith.constant 0.000000e+00 : f32
      %12 = vector.broadcast %cst_10 : f32 to vector<16x4xf32>
      %c0_11 = arith.constant 0 : index
      %c0_12 = arith.constant 0 : index
      %13 = vector.load %arg5[%c0_11, %c0_12] : memref<16x4xf32, #tpu.memory_space<vmem>>, vector<16x4xf32>
      tpu.vector_store %arg5[%c0_11, %c0_12], %12 {strides = array<i32>} : memref<16x4xf32, #tpu.memory_space<vmem>>, vector<16x4xf32>,
    } else {
    }
    %c0 = arith.constant 0 : index
    %c0_1 = arith.constant 0 : index
    %3 = vector.load %arg5[%c0, %c0_1] : memref<16x4xf32, #tpu.memory_space<vmem>>, vector<16x4xf32>
    %c0_2 = arith.constant 0 : index
    %c0_3 = arith.constant 0 : index
    %4 = vector.load %arg2[%c0_2, %c0_3] : memref<16x64xf32, #tpu.memory_space<vmem>>, vector<16x64xf32>
    %c0_4 = arith.constant 0 : index
    %c0_5 = arith.constant 0 : index
    %5 = vector.load %arg3[%c0_4, %c0_5] : memref<64x4xf32, #tpu.memory_space<vmem>>, vector<64x4xf32>
    %cst = arith.constant dense<0.000000e+00> : vector<16x4xf32>
    %6 = tpu.matmul %4, %5, %cst {dimension_numbers = #tpu.dot_dimension_numbers<[1], [0], [0], [1], [0, 0, 1, 1], [], []>} : vector<16x64xf32>, vector<64x4xf32>, vector<16x4xf32> -> vector<16x4xf32>
    %7 = arith.addf %3, %6 : vector<16x4xf32>
    %c0_6 = arith.constant 0 : index
    %c0_7 = arith.constant 0 : index
    %8 = vector.load %arg5[%c0_6, %c0_7] : memref<16x4xf32, #tpu.memory_space<vmem>>, vector<16x4xf32>
    tpu.vector_store %arg5[%c0_6, %c0_7], %7 {strides = array<i32>} : memref<16x4xf32, #tpu.memory_space<vmem>>, vector<16x4xf32>,
    %c0_i32_8 = arith.constant 0 : i32
    %9 = arith.cmpi eq, %arg1, %c0_i32_8 : i32
    %10 = arith.extui %9 : i1 to i32
    %c0_i32_9 = arith.constant 0 : i32
    %11 = arith.cmpi ne, %10, %c0_i32_9 : i32
    scf.if %11 {
      %c0_10 = arith.constant 0 : index
      %c0_11 = arith.constant 0 : index
      %12 = vector.load %arg5[%c0_10, %c0_11] : memref<16x4xf32, #tpu.memory_space<vmem>>, vector<16x4xf32>
      %cst_12 = arith.constant 6.250000e-02 : f32
      %13 = vector.broadcast %cst_12 : f32 to vector<16x4xf32>
      %14 = arith.mulf %12, %13 : vector<16x4xf32>
      %c0_13 = arith.constant 0 : index
      %c0_14 = arith.constant 0 : index
      %15 = vector.load %arg4[%c0_13, %c0_14] : memref<16x4xf32, #tpu.memory_space<vmem>>, vector<16x4xf32>
      tpu.vector_store %arg4[%c0_13, %c0_14], %14 {strides = array<i32>} : memref<16x4xf32, #tpu.memory_space<vmem>>, vector<16x4xf32>,
    } else {
    }
    return
  }
  func.func @transform_0(%arg0: i32, %arg1: i32) -> (i32, i32) {
    %c0_i32 = arith.constant 0 : i32
    return %arg0, %arg1 : i32, i32
  }
  func.func @transform_1(%arg0: i32, %arg1: i32) -> (i32, i32) {
    %c0_i32 = arith.constant 0 : i32
    %c0_i32_0 = arith.constant 0 : i32
    return %arg1, %c0_i32 : i32, i32
  }
  func.func @transform_2(%arg0: i32, %arg1: i32) -> (i32, i32) {
    %c0_i32 = arith.constant 0 : i32
    %c0_i32_0 = arith.constant 0 : i32
    return %arg0, %c0_i32 : i32, i32
  }
}

</mosaic_0001>

<llo_original>
// kernel: adaptive_avg_pool2d.1
$region0: #{adaptive_avg_pool2d.1}
  #allocation0 [shape = 'u32[]', space=smem, size = 0x4, offset = 0x4, fixed_abs, tag = 'smem constant byte address 0x4 - core index']
  #allocation1 [shape = 'u32[144,128]{1,0:T(1,128)}', space=vmem, size = 0x12000, scoped, tag = 'internal scratch']
  #allocation2 [shape = 'f32[16,4]{1,0:T(8,128)}', space=vmem, size = 0x2000, scoped, tag = 'scratch operand']
  %s0 = inlined_call_operand.vmem [shape: f32[32,64], index: 0, kind: input, shape index: {}]
  %s1 = inlined_call_operand.vmem [shape: f32[64,4], index: 1, kind: input, shape index: {}]
  %s2 = inlined_call_operand.hbm [shape: f32[32,4], index: 2, kind: output, shape index: {}]
  %s3 = sld [smem:[#allocation0]]
  $region49: #{adaptive_avg_pool2d.1} parent=0
    _
  %s5 = ssub.s32 1, %s3
  %s6 = scalar_select 0, %s5, %s3
  $region1: #{adaptive_avg_pool2d.1} parent=0
    #allocation3 [shape = 'u8[16384]{0}', space=vmem, size = 0x4000, scoped, tag = 'output window, operand 0']
    #allocation4 [shape = 's32[2]{0}', space=sflag, size = 0x8, scoped, tag = 'scoped memory for adaptive_avg_pool2d.1']
    %7 = vsyncpa [#allocation4], 0
    %s8 = scalar_lea.sflag [#allocation4], 1
    %9 = vsyncpa %s8, 0
    loop: start=0, step=1, limit=4
    $region2: #{adaptive_avg_pool2d.1} parent=1 // loop_pre_header
      _
    $region3: #{adaptive_avg_pool2d.1} parent=1 // loop_header
      %s11 = sphi 0, %s15
      %p12 = scmp.ge.s32.totalorder %s11, 4
      %s18 = sphi 0, %s30
      %s19 = sphi 0, %s26
      %s20 = sphi 0, %s18
      %s21 = sphi 0, %s19
      %s22 = sphi 0, %s20
      %s23 = sphi 0, %s21
      %s35 = sphi 0, %s37
      %s38 = sphi 0, %s35
      %s39 = sphi 0, %s38
      %s55 = sphi 0, %s39
      %s61 = sphi 0, %s63
      %s64 = sphi 0, %s61
      %s65 = sphi 0, %s64
      %s81 = sphi 0, %s65
      %s87 = sphi 0, %s89
      %s90 = sphi 0, %s87
      %s91 = sphi 0, %s90
      %s107 = sphi 0, %s91
    $region4: #{adaptive_avg_pool2d.1} parent=1 // loop_header_branch
      %14 = sbr.rel (%p12) target = $region8
    $region5: #{adaptive_avg_pool2d.1} parent=1 // loop_body
      %s16 = ssub.s32 %s11, 1
      %s17 = ssub.s32 %s11, 2
      %s24 = sadd.s32 1, %s19
      %p25 = scmp.ge.s32.totalorder %s24, 1
      %s26 = scalar_select %p25, 0, %s24
      %s27 = sadd.s32 1, %s18
      %s28 = scalar_select %p25, %s27, %s18
      %p29 = scmp.ge.s32.totalorder %s28, 2
      %s30 = scalar_select %p29, 0, %s28
      %s31 = ssub.s32 %s18, %s30
      %s32 = ssub.s32 %s19, %s26
      %s33 = sor.u32 %s31, %s32
      %p34 = scmp.eq.s32.totalorder %s33, 0
      %s36 = sadd.s32 %s35, 1
      %s37 = scalar_select %p34, %s35, %s36
      %p40 = pneg %p34
      %p41 = scmp.eq.s32.totalorder %s11, 1
      %p42 = por %p40, %p41
      %p43 = scmp.ne.s32.totalorder %s35, %s38
      %p44 = scmp.eq.s32.totalorder %s11, 0
      %p45 = por %p43, %p44
      %p46 = scmp.ne.s32.totalorder %s35, %s38
      %p47 = scmp.eq.s32.totalorder %s16, 1
      %p48 = por %p46, %p47
      %p49 = scmp.ne.s32.totalorder %s38, %s39
      %p50 = scmp.eq.s32.totalorder %s16, 0
      %p51 = por %p49, %p50
      %p52 = scmp.ne.s32.totalorder %s38, %s39
      %p53 = scmp.eq.s32.totalorder %s17, 1
      %p54 = por %p52, %p53
      %p56 = scmp.ne.s32.totalorder %s39, %s55
      %p57 = scmp.eq.s32.totalorder %s17, 0
      %p58 = por %p56, %p57
      %s59 = ssub.s32 %s19, %s26
      %p60 = scmp.eq.s32.totalorder %s59, 0
      %s62 = sadd.s32 %s61, 1
      %s63 = scalar_select %p60, %s61, %s62
      %p66 = pneg %p60
      %p67 = scmp.eq.s32.totalorder %s11, 1
      %p68 = por %p66, %p67
      %p69 = scmp.ne.s32.totalorder %s61, %s64
      %p70 = scmp.eq.s32.totalorder %s11, 0
      %p71 = por %p69, %p70
      %p72 = scmp.ne.s32.totalorder %s61, %s64
      %p73 = scmp.eq.s32.totalorder %s16, 1
      %p74 = por %p72, %p73
      %p75 = scmp.ne.s32.totalorder %s64, %s65
      %p76 = scmp.eq.s32.totalorder %s16, 0
      %p77 = por %p75, %p76
      %p78 = scmp.ne.s32.totalorder %s64, %s65
      %p79 = scmp.eq.s32.totalorder %s17, 1
      %p80 = por %p78, %p79
      %p82 = scmp.ne.s32.totalorder %s65, %s81
      %p83 = scmp.eq.s32.totalorder %s17, 0
      %p84 = por %p82, %p83
      %s85 = ssub.s32 %s18, %s30
      %p86 = scmp.eq.s32.totalorder %s85, 0
      %s88 = sadd.s32 %s87, 1
      %s89 = scalar_select %p86, %s87, %s88
      %p92 = pneg %p86
      %p93 = scmp.eq.s32.totalorder %s11, 1
      %p94 = por %p92, %p93
      %p95 = scmp.ne.s32.totalorder %s87, %s90
      %p96 = scmp.eq.s32.totalorder %s11, 0
      %p97 = por %p95, %p96
      %p98 = scmp.ne.s32.totalorder %s87, %s90
      %p99 = scmp.eq.s32.totalorder %s16, 1
      %p100 = por %p98, %p99
      %p101 = scmp.ne.s32.totalorder %s90, %s91
      %p102 = scmp.eq.s32.totalorder %s16, 0
      %p103 = por %p101, %p102
      %p104 = scmp.ne.s32.totalorder %s90, %s91
      %p105 = scmp.eq.s32.totalorder %s17, 1
      %p106 = por %p104, %p105
      %p108 = scmp.ne.s32.totalorder %s91, %s107
      %p109 = scmp.eq.s32.totalorder %s17, 0
      %p110 = por %p108, %p109
      %p111 = scmp.le.s32.totalorder 1, %s11
      %p112 = scmp.lt.s32.totalorder %s11, 3
      %p113 = pnand %p111, %p112
      %p114 = pneg %p113
      // Predicated region
      $region9: #{adaptive_avg_pool2d.1} parent=5 // pred_check
        _
      $region10: #{adaptive_avg_pool2d.1} parent=5 // pred_check_branch
        %116 = sbr.rel (%p113) target = $region12
      $region11: #{adaptive_avg_pool2d.1} parent=5 // pred_region
        %s117 = ssub.s32 %s11, 1
        // Predicated region
        $region13: #{adaptive_avg_pool2d.1} parent=11 // pred_check
          %p118 = pneg %p77
        $region14: #{adaptive_avg_pool2d.1} parent=11 // pred_check_branch
          %120 = sbr.rel (%p118) target = $region16
        $region15: #{adaptive_avg_pool2d.1} parent=11 // pred_region
          %s121 = smul.u32 8, %s21
          %p122 = scmp.lt.s32.totalorder %s121, 7
          %s123 = scalar_select %p122, %s121, 7
          %s124 = smul.addr %s123, 8
          %s125 = scalar_lea.vmem %s1, %s124
          %s126 = smul.u32 8, %s21
        $region16: #{adaptive_avg_pool2d.1} parent=11 // pred_fallthru
          _
      $region12: #{adaptive_avg_pool2d.1} parent=5 // pred_fallthru
        _
      %p127 = scmp.lt.s32.totalorder %s11, 2
      // Predicated region
      $region17: #{adaptive_avg_pool2d.1} parent=5 // pred_check
        %p128 = pneg %p127
      $region18: #{adaptive_avg_pool2d.1} parent=5 // pred_check_branch
        %130 = sbr.rel (%p128) target = $region20
      $region19: #{adaptive_avg_pool2d.1} parent=5 // pred_region
        // Predicated region
        $region21: #{adaptive_avg_pool2d.1} parent=19 // pred_check
          %p131 = pneg %p45
        $region22: #{adaptive_avg_pool2d.1} parent=19 // pred_check_branch
          %133 = sbr.rel (%p131) target = $region24
        $region23: #{adaptive_avg_pool2d.1} parent=19 // pred_region
          %s134 = smul.u32 2, %s18
          %p135 = scmp.lt.s32.totalorder %s134, 3
          %s136 = scalar_select %p135, %s134, 3
          %p137 = scmp.lt.s32.totalorder %s19, 0
          %s138 = scalar_select %p137, %s19, 0
          %s139 = sadd.s32 %s138, %s136
          %s140 = smul.addr %s139, 8
          %s141 = scalar_lea.vmem %s0, %s140
          %s142 = smul.u32 2, %s18
        $region24: #{adaptive_avg_pool2d.1} parent=19 // pred_fallthru
          _
      $region20: #{adaptive_avg_pool2d.1} parent=5 // pred_fallthru
        _
      %p143 = scmp.le.s32.totalorder 1, %s11
      %p144 = scmp.lt.s32.totalorder %s11, 3
      %p145 = pnand %p143, %p144
      %p146 = pneg %p145
      // Predicated region
      $region25: #{adaptive_avg_pool2d.1} parent=5 // pred_check
        _
      $region26: #{adaptive_avg_pool2d.1} parent=5 // pred_check_branch
        %148 = sbr.rel (%p145) target = $region28
      $region27: #{adaptive_avg_pool2d.1} parent=5 // pred_region
        %s149 = ssub.s32 %s11, 1
        %s150 = smul.u32 2, %s20
        %p151 = scmp.lt.s32.totalorder %s150, 3
        %s152 = scalar_select %p151, %s150, 3
        %p153 = scmp.lt.s32.totalorder %s21, 0
        %s154 = scalar_select %p153, %s21, 0
        %s155 = sadd.s32 %s154, %s152
        %s156 = smul.addr %s155, 8
        %s157 = scalar_lea.vmem %s0, %s156
        %p158 = pneg %p51
        %p159 = pneg %p48
        %s160 = smul.u32 8, %s21
        %p161 = scmp.lt.s32.totalorder %s160, 7
        %s162 = scalar_select %p161, %s160, 7
        %s163 = smul.addr %s162, 8
        %s164 = scalar_lea.vmem %s1, %s163
        %p165 = pneg %p77
        %p166 = pneg %p74
        %p167 = pneg %p103
        %p168 = pneg %p100
        %s169 = sand.u32 %s90, 1
        %s170 = scalar_lea.sflag [#allocation4], %s169
        %s171 = sand.u32 %s90, 1
        %s172 = smul.addr %s171, 16
        %s173 = scalar_lea.vmem [#allocation3], %s172
        %s174 = smul.u32 2, %s20
        %p175 = scmp.lt.s32.totalorder %s174, 3
        %s176 = scalar_select %p175, %s174, 3
        %p177 = scmp.lt.s32.totalorder %s21, 0
        %s178 = scalar_select %p177, %s21, 0
        %s179 = sadd.s32 %s178, %s176
        %s180 = smul.addr %s179, 8
        %s181 = scalar_lea.vmem %s0, %s180
        %s182 = smul.u32 2, %s20
        %s183 = smul.u32 8, %s21
        %p184 = scmp.lt.s32.totalorder %s183, 7
        %s185 = scalar_select %p184, %s183, 7
        %s186 = smul.addr %s185, 8
        %s187 = scalar_lea.vmem %s1, %s186
        %s188 = smul.u32 8, %s21
        %s189 = smul.u32 2, %s20
        %p190 = scmp.eq.s32.totalorder %s21, 0
        // Predicated region
        $region29: #{adaptive_avg_pool2d.1} parent=27 // pred_check
          %p191 = pneg %p190
        $region30: #{adaptive_avg_pool2d.1} parent=27 // pred_check_branch
          %193 = sbr.rel (%p191) target = $region32
        $region31: #{adaptive_avg_pool2d.1} parent=27 // pred_region
          %vm194 = vcmask 31744
          %195 = vst.msk [vmem:[#allocation2] sm:$0xff] %vm194, 0.0
          %196 = vst.msk [vmem:[#allocation2 + $0x8] sm:$0xff] %vm194, 0.0
        $region32: #{adaptive_avg_pool2d.1} parent=27 // pred_fallthru
          _
        %v197 = vld [vmem:[#allocation2] sm:$0xff]
        %v198 = vld [vmem:[#allocation2 + $0x8] sm:$0xff]
        %v199 = vld [vmem:[%s181] sm:$0xff]
        %v200 = vld [vmem:[%s181 + $0x8] sm:$0xff]
        %v201 = vld [vmem:[%s187] sm:$0xff]
        %v202 = vld [vmem:[%s187 + $0x8] sm:$0xff]
        %v203 = vld [vmem:[%s187 + $0x10] sm:$0xff]
        %v204 = vld [vmem:[%s187 + $0x18] sm:$0xff]
        %v205 = vld [vmem:[%s187 + $0x20] sm:$0xff]
        %v206 = vld [vmem:[%s187 + $0x28] sm:$0xff]
        %v207 = vld [vmem:[%s187 + $0x30] sm:$0xff]
        %v208 = vld [vmem:[%s187 + $0x38] sm:$0xff]
        %vm209 = vcmask 523264
        %v211 = vsel %vm209, %v199, 0
        %v214 = vsel %vm209, %v200, 0
        %216 = vmatprep.subr.mxu0 0.0
        %217 = vmatpush1.msra.mxu0 0.0
        %218 = vmatprep.subr.mxu0 0.0
        %219 = vmatpush1.msra.mxu0 0.0
        %220 = vmatprep.subr.mxu0 0.0
        %221 = vmatpush1.msra.mxu0 0.0
        %222 = vmatprep.subr.mxu0 0.0
        %223 = vmatpush1.msra.mxu0 0.0
        %224 = vmatprep.subr.mxu0 0.0
        %225 = vmatpush1.msra.mxu0 0.0
        %226 = vmatprep.subr.mxu0 0.0
        %227 = vmatpush1.msra.mxu0 0.0
        %228 = vmatprep.subr.mxu0 0.0
        %229 = vmatpush1.msra.mxu0 0.0
        %230 = vmatprep.subr.mxu0 0.0
        %231 = vmatpush1.msra.mxu0 0.0
        %232 = vmatprep.subr.mxu0 0.0
        %233 = vmatpush1.msra.mxu0 %v208
        %234 = vmatprep.subr.mxu0 0.0
        %235 = vmatpush1.msra.mxu0 %v207
        %236 = vmatprep.subr.mxu0 0.0
        %237 = vmatpush1.msra.mxu0 %v206
        %238 = vmatprep.subr.mxu0 0.0
        %239 = vmatpush1.msra.mxu0 %v205
        %240 = vmatprep.subr.mxu0 0.0
        %241 = vmatpush1.msra.mxu0 %v204
        %242 = vmatprep.subr.mxu0 0.0
        %243 = vmatpush1.msra.mxu0 %v203
        %244 = vmatprep.subr.mxu0 0.0
        %245 = vmatpush1.msra.mxu0 %v202
        %246 = vmatprep.subr.mxu0 0.0
        %247 = vmatpush1.msra.mxu0 %v201
        %248 = vmatprep.subr.mxu0 0.0
        %249 = vmatpush2.msra.mxu0 0.0
        %250 = vmatprep.subr.mxu0 0.0
        %251 = vmatpush2.msra.mxu0 0.0
        %252 = vmatprep.subr.mxu0 0.0
        %253 = vmatpush2.msra.mxu0 0.0
        %254 = vmatprep.subr.mxu0 0.0
        %255 = vmatpush2.msra.mxu0 0.0
        %256 = vmatprep.subr.mxu0 0.0
        %257 = vmatpush2.msra.mxu0 0.0
        %258 = vmatprep.subr.mxu0 0.0
        %259 = vmatpush2.msra.mxu0 0.0
        %260 = vmatprep.subr.mxu0 0.0
        %261 = vmatpush2.msra.mxu0 0.0
        %262 = vmatprep.subr.mxu0 0.0
        %263 = vmatpush2.msra.mxu0 0.0
        %264 = vmatprep.subr.mxu0 0.0
        %265 = vmatpush2.msra.mxu0 0.0
        %266 = vmatprep.subr.mxu0 0.0
        %267 = vmatpush2.msra.mxu0 0.0
        %268 = vmatprep.subr.mxu0 0.0
        %269 = vmatpush2.msra.mxu0 0.0
        %270 = vmatprep.subr.mxu0 0.0
        %271 = vmatpush2.msra.mxu0 0.0
        %272 = vmatprep.subr.mxu0 0.0
        %273 = vmatpush2.msra.mxu0 0.0
        %274 = vmatprep.subr.mxu0 0.0
        %275 = vmatpush2.msra.mxu0 0.0
        %276 = vmatprep.subr.mxu0 0.0
        %277 = vmatpush2.msra.mxu0 0.0
        %278 = vmatprep.subr.mxu0 0.0
        %279 = vmatpush2.msra.mxu0 0.0
        %280 = vmatprep.mubr.f32.mxu0 0.0
        %281 = vmatmul.mubr.f32.gmra.mxu0 %v211
        %v282 = vpop.f32.mrf.mxu0
        %v283 = vadd.f32 0.0, %v282
        %v284 = vpop.f32.mrf.mxu0
        %285 = vmatprep.mubr.f32.mxu0 0.0
        %286 = vmatmul.mubr.f32.gmra.mxu0 %v214
        %v287 = vpop.f32.mrf.mxu0
        %v288 = vadd.f32 0.0, %v287
        %v289 = vpop.f32.mrf.mxu0
        %290 = vdwg.mxu0
        %v291 = vadd.f32 %v197, %v283
        %v292 = vadd.f32 %v198, %v288
        %vm293 = vcmask 31744
        %294 = vst.msk [vmem:[#allocation2] sm:$0xff] %vm293, %v291
        %295 = vst.msk [vmem:[#allocation2 + $0x8] sm:$0xff] %vm293, %v292
        // Predicated region
        $region33: #{adaptive_avg_pool2d.1} parent=27 // pred_check
          %p296 = pneg %p190
        $region34: #{adaptive_avg_pool2d.1} parent=27 // pred_check_branch
          %298 = sbr.rel (%p296) target = $region36
        $region35: #{adaptive_avg_pool2d.1} parent=27 // pred_region
          %v299 = vld [vmem:[#allocation2] sm:$0xff]
          %v300 = vld [vmem:[#allocation2 + $0x8] sm:$0xff]
          %v301 = vmul.f32 %v299, 0.0625
          %v302 = vmul.f32 %v300, 0.0625
          %303 = vst.msk [vmem:[%s173] sm:$0xff] %vm293, %v301
          %304 = vst.msk [vmem:[%s173 + $0x8] sm:$0xff] %vm293, %v302
        $region36: #{adaptive_avg_pool2d.1} parent=27 // pred_fallthru
          _
        %s305 = sand.u32 %s90, 1
        %s306 = scalar_lea.sflag [#allocation4], %s305
        %s307 = sand.u32 %s90, 1
        %s308 = smul.addr %s307, 16
        %s309 = scalar_lea.vmem [#allocation3], %s308
        // Predicated region
        $region37: #{adaptive_avg_pool2d.1} parent=27 // pred_check
          %p310 = pneg %p100
        $region38: #{adaptive_avg_pool2d.1} parent=27 // pred_check_branch
          %312 = sbr.rel (%p310) target = $region40
        $region39: #{adaptive_avg_pool2d.1} parent=27 // pred_region
          %s313 = smul.u32 2, %s20
          %s315 = ssub.s32 256, 256
          %316 = vsyncadd %s306, %s315
          %s317 = smul.addr %s313, 128
          %s318 = scalar_lea.hbm %s2, %s317
          %s319 = sshll.u32 %s309, 4
          %s320 = int_to_ptr.vmem [resolvable:$true] %s319
          %325 = dma.vmem_to_hbm [thread:$0]  %s320, 256, %s318, %s306, 128, 128, 8
        $region40: #{adaptive_avg_pool2d.1} parent=27 // pred_fallthru
          _
      $region28: #{adaptive_avg_pool2d.1} parent=5 // pred_fallthru
        _
      %p326 = scmp.le.s32.totalorder 2, %s11
      // Predicated region
      $region41: #{adaptive_avg_pool2d.1} parent=5 // pred_check
        %p327 = pneg %p326
      $region42: #{adaptive_avg_pool2d.1} parent=5 // pred_check_branch
        %329 = sbr.rel (%p327) target = $region44
      $region43: #{adaptive_avg_pool2d.1} parent=5 // pred_region
        %s330 = ssub.s32 %s11, 2
        // Predicated region
        $region45: #{adaptive_avg_pool2d.1} parent=43 // pred_check
          %p331 = pneg %p106
        $region46: #{adaptive_avg_pool2d.1} parent=43 // pred_check_branch
          %333 = sbr.rel (%p331) target = $region48
        $region47: #{adaptive_avg_pool2d.1} parent=43 // pred_region
          %s334 = sand.u32 %s91, 1
          %s335 = scalar_lea.sflag [#allocation4], %s334
          %s336 = sand.u32 %s91, 1
          %s337 = smul.addr %s336, 16
          %s338 = scalar_lea.vmem [#allocation3], %s337
          %339 = dma.done %s335, 256
        $region48: #{adaptive_avg_pool2d.1} parent=43 // pred_fallthru
          _
      $region44: #{adaptive_avg_pool2d.1} parent=5 // pred_fallthru
        _
    $region6: #{adaptive_avg_pool2d.1} parent=1 // loop_footer
      %s15 = sadd.s32 1, %s11
    $region7: #{adaptive_avg_pool2d.1} parent=1 // loop_footer_branch
      %10 = sbr.rel target = $region3
    $region8: #{adaptive_avg_pool2d.1} parent=1 // loop_exit
      _
    %340 = vsyncpa [#allocation4], 1
    %s341 = scalar_lea.sflag [#allocation4], 1
    %342 = vsyncpa %s341, 1

</llo_original>
